<compile_context>
chip_gen: v7x
topology: tpu7x:2x2x1
jax: 0.10.0
libtpu: 0.0.40
codegen_flags: <defaults>
</compile_context>

<pallas_src>
import functools

import jax
import jax.numpy as jnp
from jax import lax
from jax.experimental import pallas as pl
from jax.experimental.pallas import tpu as pltpu

EPS = 1e-5  # nn.LayerNorm default


def _round_up(a: int, b: int) -> int:
    return ((a + b - 1) // b) * b


def _prenorm_linear_kernel(x_ref, w_ref, b_ref, o_ref, *, inv_d: float):
    # x_ref : (TM, D_pad)    tile of rows (zero-padded beyond true D)
    # w_ref : (D_pad, TN)    folded weight  W' = gamma[:,None] * W  (zero-padded)
    # b_ref : (1, TN)        folded bias    b' = bias + beta @ W    (f32)
    # o_ref : (TM, TN)
    x = x_ref[...].astype(jnp.float32)

    # --- LayerNorm stats, single pass over the tile (f32) ---
    # Padded columns are zero, so sums are exact; divide by the true D.
    s = jnp.sum(x, axis=-1, keepdims=True)
    sq = jnp.sum(x * x, axis=-1, keepdims=True)
    mean = s * inv_d
    var = jnp.maximum(sq * inv_d - mean * mean, 0.0)
    inv = lax.rsqrt(var + EPS)

    # Normalized activations; gamma/beta are already folded into W'/b'.
    # Padded columns of xn are nonzero, but the matching rows of W' are zero.
    xn = ((x - mean) * inv).astype(w_ref.dtype)

    # --- fn: Linear on the MXU, f32 accumulation ---
    out = jnp.dot(xn, w_ref[...], preferred_element_type=jnp.float32)
    out = out + b_ref[...].astype(jnp.float32)

    o_ref[...] = out.astype(o_ref.dtype)


def prenorm_linear(x, gamma, beta, w, bias, *, tile_rows=512, block_n=1024):
    """x: (B, S, D) -> (B, S, D_out) = Linear(LayerNorm(x))."""
    B, S, D = x.shape
    D_out = w.shape[1]
    M = B * S

    # --- fold LayerNorm affine into the Linear layer (exact algebra) ---
    w_f32 = w.astype(jnp.float32)
    w_fold = (gamma.astype(jnp.float32)[:, None] * w_f32).astype(w.dtype)
    b_fold = bias.astype(jnp.float32) + beta.astype(jnp.float32) @ w_f32

    # --- lane-dense padding of the contraction and output dims ---
    D_pad = _round_up(D, 128)
    tn = min(block_n, _round_up(D_out, 128))          # multiple of 128
    N_pad = _round_up(D_out, tn)                      # multiple of tn and 128

    # --- pick the largest row tile that fits a conservative VMEM budget ---
    tm = min(tile_rows, _round_up(M, 16))             # multiple of 16 (bf16-safe)

    def tile_bytes(tm_):
        return (2 * tm_ * D_pad * x.dtype.itemsize      # x tile, double-buffered
                + 2 * D_pad * tn * w.dtype.itemsize     # W tile, double-buffered
                + 2 * tm_ * tn * x.dtype.itemsize       # out tile
                + 2 * tn * 4)                           # bias tile

    VMEM_BUDGET = 48 * 1024 * 1024                     # leaves headroom on v7x (64 MiB)
    while tile_bytes(tm) > VMEM_BUDGET and tm > 16:
        tm = max(16, tm // 2)

    M_pad = _round_up(M, tm)

    # --- pad operands (zeros; sliced off on the way out) ---
    x2 = jnp.pad(x.reshape(M, D), ((0, M_pad - M), (0, D_pad - D)))
    w2 = jnp.pad(w_fold, ((0, D_pad - D), (0, N_pad - D_out)))
    b2 = jnp.pad(b_fold, (0, N_pad - D_out)).reshape(1, N_pad)

    kernel = functools.partial(_prenorm_linear_kernel, inv_d=1.0 / D)

    grid = (M_pad // tm, N_pad // tn)
    out2 = pl.pallas_call(
        kernel,
        out_shape=jax.ShapeDtypeStruct((M_pad, N_pad), x.dtype),
        grid_spec=pl.GridSpec(
            grid=grid,
            in_specs=[
                pl.BlockSpec((tm, D_pad), lambda i, j: (i, 0)),   # x rows
                pl.BlockSpec((D_pad, tn), lambda i, j: (0, j)),   # folded W
                pl.BlockSpec((1, tn), lambda i, j: (0, j)),       # folded bias
            ],
            out_specs=pl.BlockSpec((tm, tn), lambda i, j: (i, j)),
        ),
        compiler_params=pltpu.CompilerParams(
            dimension_semantics=("parallel", "parallel"),
            vmem_limit_bytes=64 * 1024 * 1024,
        ),
        cost_estimate=pl.CostEstimate(
            flops=2 * M * D * D_out,
            transcendentals=M,
            bytes_accessed=(M * D * x.dtype.itemsize
                            + D * D_out * w.dtype.itemsize
                            + M * D_out * x.dtype.itemsize),
        ),
    )(x2, w2, b2)

    return out2[:M, :D_out].reshape(B, S, D_out)


def reference(x, gamma, beta, w, bias):
    xf = x.astype(jnp.float32)
    mean = jnp.mean(xf, axis=-1, keepdims=True)
    xc = xf - mean
    var = jnp.mean(xc * xc, axis=-1, keepdims=True)
    y = xc * lax.rsqrt(var + EPS) * gamma + beta
    return (y @ w.astype(jnp.float32) + bias).astype(x.dtype)


if __name__ == "__main__":
    key = jax.random.PRNGKey(0)
    k_x, k_w, k_b, k_g, k_be = jax.random.split(key, 5)

    B, S, D, D_out = 2, 8, 32, 32
    x = jax.random.normal(k_x, (B, S, D), dtype=jnp.float32)

    # Non-trivial LayerNorm affine params to exercise the gamma/beta fold.
    gamma = 1.0 + 0.1 * jax.random.normal(k_g, (D,), dtype=jnp.float32)
    beta = 0.1 * jax.random.normal(k_be, (D,), dtype=jnp.float32)
    # fn = Linear(D, D_out): deterministic synthetic weights
    w = jax.random.normal(k_w, (D, D_out), dtype=jnp.float32) * (1.0 / jnp.sqrt(D))
    bias = jax.random.normal(k_b, (D_out,), dtype=jnp.float32) * 0.01

    out = prenorm_linear(x, gamma, beta, w, bias)
    out = jax.block_until_ready(out)

    ref = reference(x, gamma, beta, w, bias)
    assert out.shape == (B, S, D_out)
    assert jnp.allclose(out, ref, atol=1e-4, rtol=1e-4), "mismatch vs reference"

    print("KERNEL_OK")
</pallas_src>

<mosaic_0001>
module attributes {stable_mosaic.version = 11 : i64} {
  func.func @_prenorm_linear_kernel(%arg0: i32, %arg1: i32, %arg2: memref<16x128xf32, #tpu.memory_space<vmem>>, %arg3: memref<128x128xf32, #tpu.memory_space<vmem>>, %arg4: memref<1x128xf32, #tpu.memory_space<vmem>>, %arg5: memref<16x128xf32, #tpu.memory_space<vmem>>) attributes {dimension_semantics = [#tpu.dimension_semantics<parallel>, #tpu.dimension_semantics<parallel>], iteration_bounds = array<i64: 1, 1>, scalar_prefetch = 0 : i64, scratch_operands = 0 : i64, tpu.core_type = #tpu.core_type<tc>, window_params = [{transform_indices = @transform_0, window_bounds = array<i64: 16, 128>}, {transform_indices = @transform_1, window_bounds = array<i64: 128, 128>}, {transform_indices = @transform_2, window_bounds = array<i64: 1, 128>}, {transform_indices = @transform_3, window_bounds = array<i64: 16, 128>}]} {
    %c0 = arith.constant 0 : index
    %c0_0 = arith.constant 0 : index
    %0 = vector.load %arg2[%c0, %c0_0] : memref<16x128xf32, #tpu.memory_space<vmem>>, vector<16x128xf32>
    %cst = arith.constant dense<0.000000e+00> : vector<16xf32>
    %1 = vector.multi_reduction <add>, %0, %cst [1] : vector<16x128xf32> to vector<16xf32>
    %2 = vector.shape_cast %1 : vector<16xf32> to vector<16x1xf32>
    %3 = arith.mulf %0, %0 : vector<16x128xf32>
    %cst_1 = arith.constant dense<0.000000e+00> : vector<16xf32>
    %4 = vector.multi_reduction <add>, %3, %cst_1 [1] : vector<16x128xf32> to vector<16xf32>
    %5 = vector.shape_cast %4 : vector<16xf32> to vector<16x1xf32>
    %cst_2 = arith.constant 3.125000e-02 : f32
    %6 = vector.broadcast %cst_2 : f32 to vector<16x1xf32>
    %7 = arith.mulf %2, %6 : vector<16x1xf32>
    %cst_3 = arith.constant 3.125000e-02 : f32
    %8 = vector.broadcast %cst_3 : f32 to vector<16x1xf32>
    %9 = arith.mulf %5, %8 : vector<16x1xf32>
    %10 = arith.mulf %7, %7 : vector<16x1xf32>
    %11 = arith.subf %9, %10 : vector<16x1xf32>
    %cst_4 = arith.constant 0.000000e+00 : f32
    %12 = vector.broadcast %cst_4 : f32 to vector<16x1xf32>
    %13 = arith.maximumf %11, %12 : vector<16x1xf32>
    %cst_5 = arith.constant 9.99999974E-6 : f32
    %14 = vector.broadcast %cst_5 : f32 to vector<16x1xf32>
    %15 = arith.addf %13, %14 : vector<16x1xf32>
    %16 = math.rsqrt %15 : vector<16x1xf32>
    %17 = vector.broadcast %7 : vector<16x1xf32> to vector<16x128xf32>
    %18 = arith.subf %0, %17 : vector<16x128xf32>
    %19 = vector.broadcast %16 : vector<16x1xf32> to vector<16x128xf32>
    %20 = arith.mulf %18, %19 : vector<16x128xf32>
    %c0_6 = arith.constant 0 : index
    %c0_7 = arith.constant 0 : index
    %21 = vector.load %arg3[%c0_6, %c0_7] : memref<128x128xf32, #tpu.memory_space<vmem>>, vector<128x128xf32>
    %cst_8 = arith.constant dense<0.000000e+00> : vector<16x128xf32>
    %22 = tpu.matmul %20, %21, %cst_8 {dimension_numbers = #tpu.dot_dimension_numbers<[1], [0], [0], [1], [0, 0, 1, 1], [], []>} : vector<16x128xf32>, vector<128x128xf32>, vector<16x128xf32> -> vector<16x128xf32>
    %c0_9 = arith.constant 0 : index
    %c0_10 = arith.constant 0 : index
    %23 = vector.load %arg4[%c0_9, %c0_10] : memref<1x128xf32, #tpu.memory_space<vmem>>, vector<1x128xf32>
    %24 = vector.broadcast %23 : vector<1x128xf32> to vector<16x128xf32>
    %25 = arith.addf %22, %24 : vector<16x128xf32>
    %c0_11 = arith.constant 0 : index
    %c0_12 = arith.constant 0 : index
    %26 = vector.load %arg5[%c0_11, %c0_12] : memref<16x128xf32, #tpu.memory_space<vmem>>, vector<16x128xf32>
    tpu.vector_store %arg5[%c0_11, %c0_12], %25 {strides = array<i32>} : memref<16x128xf32, #tpu.memory_space<vmem>>, vector<16x128xf32>,
    return
  }
  func.func @transform_0(%arg0: i32, %arg1: i32) -> (i32, i32) {
    %c0_i32 = arith.constant 0 : i32
    %c0_i32_0 = arith.constant 0 : i32
    return %arg0, %c0_i32 : i32, i32
  }
  func.func @transform_1(%arg0: i32, %arg1: i32) -> (i32, i32) {
    %c0_i32 = arith.constant 0 : i32
    %c0_i32_0 = arith.constant 0 : i32
    return %c0_i32, %arg1 : i32, i32
  }
  func.func @transform_2(%arg0: i32, %arg1: i32) -> (i32, i32) {
    %c0_i32 = arith.constant 0 : i32
    %c0_i32_0 = arith.constant 0 : i32
    return %c0_i32, %arg1 : i32, i32
  }
  func.func @transform_3(%arg0: i32, %arg1: i32) -> (i32, i32) {
    %c0_i32 = arith.constant 0 : i32
    return %arg0, %arg1 : i32, i32
  }
}

</mosaic_0001>

<llo_original>
// kernel: tpu_custom_call.1
$region0: #{tpu_custom_call.1}
  #allocation0 [shape = 'u32[]', space=smem, size = 0x4, offset = 0x4, fixed_abs, tag = 'smem constant byte address 0x4 - core index']
  #allocation1 [shape = 'u32[144,128]{1,0:T(1,128)}', space=vmem, size = 0x12000, scoped, tag = 'internal scratch']
  %s0 = inlined_call_operand.hbm [shape: f32[16,128], index: 0, kind: input, shape index: {}]
  %s1 = inlined_call_operand.hbm [shape: f32[128,128], index: 1, kind: input, shape index: {}]
  %s2 = inlined_call_operand.hbm [shape: f32[1,128], index: 2, kind: input, shape index: {}]
  %s3 = inlined_call_operand.hbm [shape: f32[16,128], index: 3, kind: output, shape index: {}]
  %s4 = sld [smem:[#allocation0]]
  $region34: #{tpu_custom_call.1} parent=0
    _
  %s6 = ssub.s32 1, %s4
  %s7 = scalar_select 0, %s6, %s4
  $region1: #{tpu_custom_call.1} parent=0
    #allocation2 [shape = 'u8[8192]{0}', space=vmem, size = 0x2000, scoped, tag = 'input window, operand 0, single buffered']
    #allocation3 [shape = 's32[1]{0}', space=sflag, size = 0x4, scoped, tag = 'scoped memory for tpu_custom_call.1']
    #allocation4 [shape = 's32[1]{0}', space=sflag, size = 0x4, scoped, tag = 'scoped memory for tpu_custom_call.1']
    #allocation5 [shape = 'u8[65536]{0}', space=vmem, size = 0x10000, scoped, tag = 'input window, operand 1, single buffered']
    #allocation6 [shape = 's32[1]{0}', space=sflag, size = 0x4, scoped, tag = 'scoped memory for tpu_custom_call.1']
    #allocation7 [shape = 'u8[512]{0}', space=vmem, size = 0x400, scoped, tag = 'input window, operand 2, single buffered']
    #allocation8 [shape = 'u8[8192]{0}', space=vmem, size = 0x2000, scoped, tag = 'output window, operand 0, single buffered']
    %8 = vsyncpa [#allocation3], 0
    %9 = vsyncpa [#allocation6], 0
    %10 = vsyncpa [#allocation4], 0
    // Predicated region
    $region2: #{tpu_custom_call.1} parent=1 // pred_check
      _
    $region3: #{tpu_custom_call.1} parent=1 // pred_check_branch
      %12 = sbr.rel (0) target = $region5
    $region4: #{tpu_custom_call.1} parent=1 // pred_region
      %s14 = ssub.s32 256, 256
      %15 = vsyncadd [#allocation3], %s14
      %s16 = sshll.u32 [#allocation2], 4
      %s17 = int_to_ptr.vmem [resolvable:$true] %s16
      %22 = dma.hbm_to_vmem [thread:$0]  %s0, 256, %s17, [#allocation3], 128, 128, 8
    $region5: #{tpu_custom_call.1} parent=1 // pred_fallthru
      _
    // Predicated region
    $region6: #{tpu_custom_call.1} parent=1 // pred_check
      _
    $region7: #{tpu_custom_call.1} parent=1 // pred_check_branch
      %24 = sbr.rel (0) target = $region9
    $region8: #{tpu_custom_call.1} parent=1 // pred_region
      %s26 = ssub.s32 2048, 2048
      %27 = vsyncadd [#allocation6], %s26
      %s28 = sshll.u32 [#allocation5], 4
      %s29 = int_to_ptr.vmem [resolvable:$true] %s28
      %34 = dma.hbm_to_vmem [thread:$0]  %s1, 2048, %s29, [#allocation6], 128, 128, 8
    $region9: #{tpu_custom_call.1} parent=1 // pred_fallthru
      _
    // Predicated region
    $region10: #{tpu_custom_call.1} parent=1 // pred_check
      _
    $region11: #{tpu_custom_call.1} parent=1 // pred_check_branch
      %36 = sbr.rel (0) target = $region13
    $region12: #{tpu_custom_call.1} parent=1 // pred_region
      %s38 = ssub.s32 16, 16
      %39 = vsyncadd [#allocation6], %s38
      %s41 = sshll.u32 [#allocation7], 4
      %s42 = int_to_ptr.vmem [resolvable:$true] %s41
      %44 = dma.hbm_to_vmem [thread:$0]  %s2, 16, %s42, [#allocation6]
    $region13: #{tpu_custom_call.1} parent=1 // pred_fallthru
      _
    // Predicated region
    $region14: #{tpu_custom_call.1} parent=1 // pred_check
      _
    $region15: #{tpu_custom_call.1} parent=1 // pred_check_branch
      %46 = sbr.rel (0) target = $region17
    $region16: #{tpu_custom_call.1} parent=1 // pred_region
      %47 = dma.done [#allocation3], 256
    $region17: #{tpu_custom_call.1} parent=1 // pred_fallthru
      _
    // Predicated region
    $region18: #{tpu_custom_call.1} parent=1 // pred_check
      _
    $region19: #{tpu_custom_call.1} parent=1 // pred_check_branch
      %49 = sbr.rel (0) target = $region21
    $region20: #{tpu_custom_call.1} parent=1 // pred_region
      %50 = dma.done [#allocation6], 2048
    $region21: #{tpu_custom_call.1} parent=1 // pred_fallthru
      _
    // Predicated region
    $region22: #{tpu_custom_call.1} parent=1 // pred_check
      _
    $region23: #{tpu_custom_call.1} parent=1 // pred_check_branch
      %52 = sbr.rel (0) target = $region25
    $region24: #{tpu_custom_call.1} parent=1 // pred_region
      %53 = dma.done [#allocation6], 16
    $region25: #{tpu_custom_call.1} parent=1 // pred_fallthru
      _
    %v54 = vld [vmem:[#allocation2] sm:$0xff]
    %v55 = vld [vmem:[#allocation2 + $0x8] sm:$0xff]
    %56 = vadd.xlane.f32.xlu0 %v54
    %v57 = vpop.xlane.xlu0 %56
    %58 = vadd.xlane.f32.xlu0 %v55
    %v59 = vpop.xlane.xlu0 %58
    %v60 = vmul.f32 %v54, %v54
    %v61 = vmul.f32 %v55, %v55
    %62 = vadd.xlane.f32.xlu0 %v60
    %v63 = vpop.xlane.xlu0 %62
    %64 = vadd.xlane.f32.xlu0 %v61
    %v65 = vpop.xlane.xlu0 %64
    %v66 = vmul.f32 %v57, 0.03125
    %v67 = vmul.f32 %v59, 0.03125
    %v68 = vmul.f32 %v63, 0.03125
    %v69 = vmul.f32 %v65, 0.03125
    %v70 = vmul.f32 %v66, %v66
    %v71 = vmul.f32 %v67, %v67
    %v72 = vsub.f32 %v68, %v70
    %v73 = vsub.f32 %v69, %v71
    %v74 = vmax.f32 %v72, 0.0
    %v75 = vmax.f32 %v73, 0.0
    %v76 = vadd.f32 %v74, 1e-05
    %v77 = vadd.f32 %v75, 1e-05
    %v78 = vrsqrt.pop %v76
    %v79 = vrsqrt.pop %v77
    %v80 = vsub.f32 %v54, %v66
    %v81 = vsub.f32 %v55, %v67
    %v82 = vmul.f32 %v80, %v78
    %v83 = vmul.f32 %v81, %v79
    %v84 = vld [vmem:[#allocation5] sm:$0xff]
    %v85 = vld [vmem:[#allocation5 + $0x8] sm:$0xff]
    %v86 = vld [vmem:[#allocation5 + $0x10] sm:$0xff]
    %v87 = vld [vmem:[#allocation5 + $0x18] sm:$0xff]
    %v88 = vld [vmem:[#allocation5 + $0x20] sm:$0xff]
    %v89 = vld [vmem:[#allocation5 + $0x28] sm:$0xff]
    %v90 = vld [vmem:[#allocation5 + $0x30] sm:$0xff]
    %v91 = vld [vmem:[#allocation5 + $0x38] sm:$0xff]
    %v92 = vld [vmem:[#allocation5 + $0x40] sm:$0xff]
    %v93 = vld [vmem:[#allocation5 + $0x48] sm:$0xff]
    %v94 = vld [vmem:[#allocation5 + $0x50] sm:$0xff]
    %v95 = vld [vmem:[#allocation5 + $0x58] sm:$0xff]
    %v96 = vld [vmem:[#allocation5 + $0x60] sm:$0xff]
    %v97 = vld [vmem:[#allocation5 + $0x68] sm:$0xff]
    %v98 = vld [vmem:[#allocation5 + $0x70] sm:$0xff]
    %v99 = vld [vmem:[#allocation5 + $0x78] sm:$0xff]
    %v100 = vld [vmem:[#allocation7] sm:$0x1]
    %v102 = vlaneseq
    %v103 = vshrl.u32 %v102, 7
    %v104 = vsub.s32 0, %v103
    %v105 = vrot.slane %v100, %v104
    %107 = vmatprep.subr.mxu0 0.0
    %108 = vmatpush1.msra.mxu0 %v84
    %109 = vmatprep.subr.mxu0 0.0
    %110 = vmatpush1.msra.mxu0 %v85
    %111 = vmatprep.subr.mxu0 0.0
    %112 = vmatpush1.msra.mxu0 %v86
    %113 = vmatprep.subr.mxu0 0.0
    %114 = vmatpush1.msra.mxu0 %v87
    %115 = vmatprep.subr.mxu0 0.0
    %116 = vmatpush1.msra.mxu0 %v88
    %117 = vmatprep.subr.mxu0 0.0
    %118 = vmatpush1.msra.mxu0 %v89
    %119 = vmatprep.subr.mxu0 0.0
    %120 = vmatpush1.msra.mxu0 %v90
    %121 = vmatprep.subr.mxu0 0.0
    %122 = vmatpush1.msra.mxu0 %v91
    %123 = vmatprep.subr.mxu0 0.0
    %124 = vmatpush1.msra.mxu0 %v92
    %125 = vmatprep.subr.mxu0 0.0
    %126 = vmatpush1.msra.mxu0 %v93
    %127 = vmatprep.subr.mxu0 0.0
    %128 = vmatpush1.msra.mxu0 %v94
    %129 = vmatprep.subr.mxu0 0.0
    %130 = vmatpush1.msra.mxu0 %v95
    %131 = vmatprep.subr.mxu0 0.0
    %132 = vmatpush1.msra.mxu0 %v96
    %133 = vmatprep.subr.mxu0 0.0
    %134 = vmatpush1.msra.mxu0 %v97
    %135 = vmatprep.subr.mxu0 0.0
    %136 = vmatpush1.msra.mxu0 %v98
    %137 = vmatprep.subr.mxu0 0.0
    %138 = vmatpush1.msra.mxu0 %v99
    %139 = vmatprep.subr.mxu0 0.0
    %140 = vmatpush1.msra.mxu0 0.0
    %141 = vmatprep.subr.mxu0 0.0
    %142 = vmatpush1.msra.mxu0 0.0
    %143 = vmatprep.subr.mxu0 0.0
    %144 = vmatpush1.msra.mxu0 0.0
    %145 = vmatprep.subr.mxu0 0.0
    %146 = vmatpush1.msra.mxu0 0.0
    %147 = vmatprep.subr.mxu0 0.0
    %148 = vmatpush1.msra.mxu0 0.0
    %149 = vmatprep.subr.mxu0 0.0
    %150 = vmatpush1.msra.mxu0 0.0
    %151 = vmatprep.subr.mxu0 0.0
    %152 = vmatpush1.msra.mxu0 0.0
    %153 = vmatprep.subr.mxu0 0.0
    %154 = vmatpush1.msra.mxu0 0.0
    %155 = vmatprep.subr.mxu0 0.0
    %156 = vmatpush1.msra.mxu0 0.0
    %157 = vmatprep.subr.mxu0 0.0
    %158 = vmatpush1.msra.mxu0 0.0
    %159 = vmatprep.subr.mxu0 0.0
    %160 = vmatpush1.msra.mxu0 0.0
    %161 = vmatprep.subr.mxu0 0.0
    %162 = vmatpush1.msra.mxu0 0.0
    %163 = vmatprep.subr.mxu0 0.0
    %164 = vmatpush1.msra.mxu0 0.0
    %165 = vmatprep.subr.mxu0 0.0
    %166 = vmatpush1.msra.mxu0 0.0
    %167 = vmatprep.subr.mxu0 0.0
    %168 = vmatpush1.msra.mxu0 0.0
    %169 = vmatprep.subr.mxu0 0.0
    %170 = vmatpush1.msra.mxu0 0.0
    %171 = vmatprep.mubr.f32.mxu0 0.0
    %172 = vmatmul.mubr.f32.gmra.mrb[0].mxu0 %v82
    %v173 = vpop.f32.mrb[0].mxu0
    %v174 = vadd.f32 %v105, %v173
    %v175 = vpop.f32.mrb[0].mxu0
    %176 = vmatprep.mubr.f32.mxu0 0.0
    %177 = vmatmul.mubr.f32.gmra.mrb[0].mxu0 %v83
    %v178 = vpop.f32.mrb[0].mxu0
    %v179 = vadd.f32 %v105, %v178
    %v180 = vpop.f32.mrb[0].mxu0
    %181 = vdwg.mxu0
    %182 = vst [vmem:[#allocation8] sm:$0xff] %v174
    %183 = vst [vmem:[#allocation8 + $0x8] sm:$0xff] %v179
    // Predicated region
    $region26: #{tpu_custom_call.1} parent=1 // pred_check
      _
    $region27: #{tpu_custom_call.1} parent=1 // pred_check_branch
      %185 = sbr.rel (0) target = $region29
    $region28: #{tpu_custom_call.1} parent=1 // pred_region
      %s187 = ssub.s32 256, 256
      %188 = vsyncadd [#allocation4], %s187
      %s189 = sshll.u32 [#allocation8], 4
      %s190 = int_to_ptr.vmem [resolvable:$true] %s189
      %195 = dma.vmem_to_hbm [thread:$0]  %s190, 256, %s3, [#allocation4], 128, 128, 8
    $region29: #{tpu_custom_call.1} parent=1 // pred_fallthru
      _
    // Predicated region
    $region30: #{tpu_custom_call.1} parent=1 // pred_check
      _
    $region31: #{tpu_custom_call.1} parent=1 // pred_check_branch
      %197 = sbr.rel (0) target = $region33
    $region32: #{tpu_custom_call.1} parent=1 // pred_region
      %198 = dma.done [#allocation4], 256
    $region33: #{tpu_custom_call.1} parent=1 // pred_fallthru
      _
    %199 = vsyncpa [#allocation3], 1
    %200 = vsyncpa [#allocation6], 1
    %201 = vsyncpa [#allocation4], 1

</llo_original>
